<compile_context>
chip_gen: v5e
topology: v5e:2x2
jax: 0.10.0
libtpu: 0.0.40
codegen_flags: <defaults>
</compile_context>

<pallas_src>
import jax
import jax.numpy as jnp
from jax.experimental import pallas as pl
from jax.experimental.pallas import tpu as pltpu

_LANE = 128


def _sum_mean_kernel(x_ref, w_ref, b_ref, o_ref):
    # x_ref: (tile_n, K*D_in)  w_ref: (K*D_in, D_out_pad)  b_ref: (1, D_out_pad)
    # K-reduction (and the 1/K mean scale) is folded into w_ref by the wrapper.
    acc = jnp.dot(x_ref[...], w_ref[...], preferred_element_type=jnp.float32)
    o_ref[...] = (acc + b_ref[...].astype(jnp.float32)).astype(o_ref.dtype)


def _max_kernel(x_ref, w_ref, b_ref, o_ref):
    # x_ref: (tile_n, K, D_in)  w_ref: (D_in, D_out_pad)  b_ref: (1, D_out_pad)
    aggr = jnp.max(x_ref[...], axis=1)
    acc = jnp.dot(aggr, w_ref[...], preferred_element_type=jnp.float32)
    o_ref[...] = (acc + b_ref[...].astype(jnp.float32)).astype(o_ref.dtype)


def neighbor_aggregator(neighbor_feature, weight, bias=None, aggr_method="mean",
                        tile_n=256, out_dtype=None):
    """Pallas TPU implementation of NeighborAggregator.forward."""
    N, K, D_in = neighbor_feature.shape
    D_in_w, D_out = weight.shape
    assert D_in == D_in_w
    if out_dtype is None:
        out_dtype = neighbor_feature.dtype

    # Lane-dense output: pad D_out (and weight columns) to a multiple of 128.
    D_out_pad = pl.cdiv(D_out, _LANE) * _LANE

    # Tile over nodes. Sublane dim of a block must be a multiple of 8 or the
    # full extent; ragged tails are handled by the cdiv grid.
    tile_n = min(tile_n, N)
    if tile_n < N:
        tile_n = max(8, (tile_n // 8) * 8)
    grid_n = pl.cdiv(N, tile_n)

    w = weight
    if D_out_pad != D_out:
        w = jnp.pad(w, ((0, 0), (0, D_out_pad - D_out)))

    if bias is None:
        b = jnp.zeros((1, D_out_pad), jnp.float32)
    else:
        b = jnp.pad(bias.astype(jnp.float32).reshape(1, D_out),
                    ((0, 0), (0, D_out_pad - D_out)))

    if aggr_method in ("mean", "sum"):
        # Fold K-reduction into the matmul: (N, K*D_in) @ (K*D_in, D_out_pad).
        x2d = neighbor_feature.reshape(N, K * D_in)
        w_big = jnp.tile(w, (K, 1))
        if aggr_method == "mean":
            w_big = (w_big.astype(jnp.float32) / K).astype(w.dtype)
        kernel = _sum_mean_kernel
        in_specs = [
            pl.BlockSpec((tile_n, K * D_in), lambda i: (i, 0)),
            pl.BlockSpec((K * D_in, D_out_pad), lambda i: (0, 0)),
            pl.BlockSpec((1, D_out_pad), lambda i: (0, 0)),
        ]
        inputs = (x2d, w_big, b)
        in_block_bytes = tile_n * K * D_in * x2d.dtype.itemsize
        w_bytes = K * D_in * D_out_pad * w_big.dtype.itemsize
    elif aggr_method == "max":
        kernel = _max_kernel
        in_specs = [
            pl.BlockSpec((tile_n, K, D_in), lambda i: (i, 0, 0)),
            pl.BlockSpec((D_in, D_out_pad), lambda i: (0, 0)),
            pl.BlockSpec((1, D_out_pad), lambda i: (0, 0)),
        ]
        inputs = (neighbor_feature, w, b)
        in_block_bytes = tile_n * K * D_in * neighbor_feature.dtype.itemsize
        w_bytes = D_in * D_out_pad * w.dtype.itemsize
    else:
        raise ValueError(
            f"Unknown aggr type, expected sum, max, or mean, but got {aggr_method}")

    out_block_bytes = tile_n * D_out_pad * jnp.dtype(out_dtype).itemsize
    vmem_needed = 2 * (in_block_bytes + out_block_bytes) + w_bytes + 4 * D_out_pad
    vmem_limit = min(max(int(vmem_needed * 1.5) + (4 << 20), 16 << 20), 100 << 20)

    out_padded = pl.pallas_call(
        kernel,
        out_shape=jax.ShapeDtypeStruct((N, D_out_pad), out_dtype),
        grid_spec=pltpu.PrefetchScalarGridSpec(
            num_scalar_prefetch=0,
            grid=(grid_n,),
            in_specs=in_specs,
            out_specs=pl.BlockSpec((tile_n, D_out_pad), lambda i: (i, 0)),
        ),
        compiler_params=pltpu.CompilerParams(
            dimension_semantics=("parallel",),
            vmem_limit_bytes=vmem_limit,
        ),
    )(*inputs)

    if D_out_pad != D_out:
        out_padded = out_padded[:, :D_out]
    return out_padded


def _kaiming_uniform(key, shape):
    # mimics nn.init.kaiming_uniform_ (a=0, fan_in = shape[0], leaky_relu gain)
    fan_in = shape[0]
    gain = jnp.sqrt(2.0)
    bound = gain * jnp.sqrt(3.0 / fan_in)
    return jax.random.uniform(key, shape, jnp.float32, -bound, bound)


if __name__ == "__main__":
    # Small shapes: 16 nodes, 4 neighbors each, input_dim=32, output_dim=16
    N, K, D_in, D_out = 16, 4, 32, 16
    key = jax.random.PRNGKey(0)
    k_x, k_w, k_b = jax.random.split(key, 3)

    neighbor_feature = jax.random.normal(k_x, (N, K, D_in), jnp.float32)
    weight = _kaiming_uniform(k_w, (D_in, D_out))
    bias = jax.random.normal(k_b, (D_out,), jnp.float32)

    ok = True
    for aggr in ("mean", "sum", "max"):
        out = neighbor_aggregator(neighbor_feature, weight, aggr_method=aggr)
        out = jax.block_until_ready(out)
        if aggr == "mean":
            agg_ref = jnp.mean(neighbor_feature, axis=1)
        elif aggr == "sum":
            agg_ref = jnp.sum(neighbor_feature, axis=1)
        else:
            agg_ref = jnp.max(neighbor_feature, axis=1)
        ref = jnp.matmul(agg_ref, weight, precision=jax.lax.Precision.HIGHEST)
        ok &= out.shape == (N, D_out)
        ok &= bool(jnp.allclose(out, ref, atol=1e-4, rtol=1e-4))

    # use_bias=True path (fused bias add inside the kernel)
    out_b = jax.block_until_ready(
        neighbor_aggregator(neighbor_feature, weight, bias=bias, aggr_method="mean"))
    ref_b = jnp.matmul(jnp.mean(neighbor_feature, axis=1), weight,
                       precision=jax.lax.Precision.HIGHEST) + bias
    ok &= bool(jnp.allclose(out_b, ref_b, atol=1e-4, rtol=1e-4))

    assert ok
    print("KERNEL_OK")
</pallas_src>

<mosaic_0001>
module attributes {stable_mosaic.version = 11 : i64} {
  func.func @_sum_mean_kernel(%arg0: i32, %arg1: memref<16x128xf32, #tpu.memory_space<vmem>>, %arg2: memref<128x128xf32, #tpu.memory_space<vmem>>, %arg3: memref<1x128xf32, #tpu.memory_space<vmem>>, %arg4: memref<16x128xf32, #tpu.memory_space<vmem>>) attributes {dimension_semantics = [#tpu.dimension_semantics<parallel>], iteration_bounds = array<i64: 1>, scalar_prefetch = 0 : i64, scratch_operands = 0 : i64, tpu.core_type = #tpu.core_type<tc>, window_params = [{transform_indices = @transform_0, window_bounds = array<i64: 16, 128>}, {pipeline_mode = #tpu.pipeline_mode<synchronous>, transform_indices = @transform_1, window_bounds = array<i64: 128, 128>}, {pipeline_mode = #tpu.pipeline_mode<synchronous>, transform_indices = @transform_2, window_bounds = array<i64: 1, 128>}, {transform_indices = @transform_3, window_bounds = array<i64: 16, 128>}]} {
    %c0 = arith.constant 0 : index
    %c0_0 = arith.constant 0 : index
    %0 = vector.load %arg1[%c0, %c0_0] : memref<16x128xf32, #tpu.memory_space<vmem>>, vector<16x128xf32>
    %c0_1 = arith.constant 0 : index
    %c0_2 = arith.constant 0 : index
    %1 = vector.load %arg2[%c0_1, %c0_2] : memref<128x128xf32, #tpu.memory_space<vmem>>, vector<128x128xf32>
    %cst = arith.constant dense<0.000000e+00> : vector<16x128xf32>
    %2 = tpu.matmul %0, %1, %cst {dimension_numbers = #tpu.dot_dimension_numbers<[1], [0], [0], [1], [0, 0, 1, 1], [], []>} : vector<16x128xf32>, vector<128x128xf32>, vector<16x128xf32> -> vector<16x128xf32>
    %c0_3 = arith.constant 0 : index
    %c0_4 = arith.constant 0 : index
    %3 = vector.load %arg3[%c0_3, %c0_4] : memref<1x128xf32, #tpu.memory_space<vmem>>, vector<1x128xf32>
    %4 = vector.broadcast %3 : vector<1x128xf32> to vector<16x128xf32>
    %5 = arith.addf %2, %4 : vector<16x128xf32>
    %c0_5 = arith.constant 0 : index
    %c0_6 = arith.constant 0 : index
    %6 = vector.load %arg4[%c0_5, %c0_6] : memref<16x128xf32, #tpu.memory_space<vmem>>, vector<16x128xf32>
    tpu.vector_store %arg4[%c0_5, %c0_6], %5 {strides = array<i32>} : memref<16x128xf32, #tpu.memory_space<vmem>>, vector<16x128xf32>,
    return
  }
  func.func @transform_0(%arg0: i32) -> (i32, i32) {
    %c0_i32 = arith.constant 0 : i32
    %c0_i32_0 = arith.constant 0 : i32
    return %arg0, %c0_i32 : i32, i32
  }
  func.func @transform_1(%arg0: i32) -> (i32, i32) {
    %c0_i32 = arith.constant 0 : i32
    %c0_i32_0 = arith.constant 0 : i32
    %c0_i32_1 = arith.constant 0 : i32
    return %c0_i32, %c0_i32_0 : i32, i32
  }
  func.func @transform_2(%arg0: i32) -> (i32, i32) {
    %c0_i32 = arith.constant 0 : i32
    %c0_i32_0 = arith.constant 0 : i32
    %c0_i32_1 = arith.constant 0 : i32
    return %c0_i32, %c0_i32_0 : i32, i32
  }
  func.func @transform_3(%arg0: i32) -> (i32, i32) {
    %c0_i32 = arith.constant 0 : i32
    %c0_i32_0 = arith.constant 0 : i32
    return %arg0, %c0_i32 : i32, i32
  }
}

</mosaic_0001>

<llo_original>
// kernel: tpu_custom_call.1
$region0: #{tpu_custom_call.1}
  #allocation0 [shape = 'u32[]', space=smem, size = 0x4, offset = 0x4, fixed_abs, tag = 'smem constant byte address 0x4 - core index']
  #allocation1 [shape = 'u32[72,128]{1,0:T(1,128)}', space=vmem, size = 0x9000, scoped, tag = 'internal scratch']
  %s0 = inlined_call_operand.hbm [shape: f32[16,128], index: 0, kind: input, shape index: {}]
  %s1 = inlined_call_operand.hbm [shape: f32[128,128], index: 1, kind: input, shape index: {}]
  %s2 = inlined_call_operand.vmem [shape: f32[1,128], index: 2, kind: input, shape index: {}]
  %s3 = inlined_call_operand.hbm [shape: f32[16,128], index: 3, kind: output, shape index: {}]
  %s4 = sld [smem:[#allocation0]]
  $region30: #{tpu_custom_call.1} parent=0
    _
  %s6 = ssub.s32 1, %s4
  %s7 = scalar_select 0, %s6, %s4
  $region1: #{tpu_custom_call.1} parent=0
    #allocation2 [shape = 'u8[8192]{0}', space=vmem, size = 0x2000, scoped, tag = 'input window, operand 0, single buffered']
    #allocation3 [shape = 's32[1]{0}', space=sflag, size = 0x4, scoped, tag = 'scoped memory for tpu_custom_call.1']
    #allocation4 [shape = 's32[1]{0}', space=sflag, size = 0x4, scoped, tag = 'scoped memory for tpu_custom_call.1']
    #allocation5 [shape = 'u8[65536]{0}', space=vmem, size = 0x10000, scoped, tag = 'input window, operand 1, single buffered']
    #allocation6 [shape = 's32[1]{0}', space=sflag, size = 0x4, scoped, tag = 'scoped memory for tpu_custom_call.1']
    #allocation7 [shape = 'u8[8192]{0}', space=vmem, size = 0x2000, scoped, tag = 'output window, operand 0, single buffered']
    %8 = vsyncpa [#allocation3], 0
    %9 = vsyncpa [#allocation6], 0
    %10 = vsyncpa [#allocation4], 0
    // Predicated region
    $region2: #{tpu_custom_call.1} parent=1 // pred_check
      _
    $region3: #{tpu_custom_call.1} parent=1 // pred_check_branch
      %12 = sbr.rel (0) target = $region5
    $region4: #{tpu_custom_call.1} parent=1 // pred_region
      %14 = vsyncadd [#allocation3], 0
      %s15 = sshll.u32 %s0, 4
      %s16 = int_to_ptr.hbm [resolvable:$true] %s15
      %s17 = sshll.u32 [#allocation2], 4
      %s18 = int_to_ptr.vmem [resolvable:$true] %s17
      %23 = dma.hbm_to_vmem [thread:$0]  %s16, 256, %s18, [#allocation3], 128, 128, 8
    $region5: #{tpu_custom_call.1} parent=1 // pred_fallthru
      _
    // Predicated region
    $region6: #{tpu_custom_call.1} parent=1 // pred_check
      _
    $region7: #{tpu_custom_call.1} parent=1 // pred_check_branch
      %25 = sbr.rel (0) target = $region9
    $region8: #{tpu_custom_call.1} parent=1 // pred_region
      %27 = vsyncadd [#allocation6], 0
      %s28 = sshll.u32 %s1, 4
      %s29 = int_to_ptr.hbm [resolvable:$true] %s28
      %s30 = sshll.u32 [#allocation5], 4
      %s31 = int_to_ptr.vmem [resolvable:$true] %s30
      %36 = dma.hbm_to_vmem [thread:$0]  %s29, 2048, %s31, [#allocation6], 128, 128, 8
    $region9: #{tpu_custom_call.1} parent=1 // pred_fallthru
      _
    // Predicated region
    $region10: #{tpu_custom_call.1} parent=1 // pred_check
      _
    $region11: #{tpu_custom_call.1} parent=1 // pred_check_branch
      %38 = sbr.rel (0) target = $region13
    $region12: #{tpu_custom_call.1} parent=1 // pred_region
      _
    $region13: #{tpu_custom_call.1} parent=1 // pred_fallthru
      _
    // Predicated region
    $region14: #{tpu_custom_call.1} parent=1 // pred_check
      _
    $region15: #{tpu_custom_call.1} parent=1 // pred_check_branch
      %40 = sbr.rel (0) target = $region17
    $region16: #{tpu_custom_call.1} parent=1 // pred_region
      %42 = dma.done [#allocation3], 256
    $region17: #{tpu_custom_call.1} parent=1 // pred_fallthru
      _
    // Predicated region
    $region18: #{tpu_custom_call.1} parent=1 // pred_check
      _
    $region19: #{tpu_custom_call.1} parent=1 // pred_check_branch
      %44 = sbr.rel (0) target = $region21
    $region20: #{tpu_custom_call.1} parent=1 // pred_region
      %46 = dma.done [#allocation6], 2048
    $region21: #{tpu_custom_call.1} parent=1 // pred_fallthru
      _
    %v47 = vld [vmem:[#allocation2] sm:$0xff]
    %v48 = vld [vmem:[#allocation2 + $0x8] sm:$0xff]
    %v49 = vld [vmem:[#allocation5] sm:$0xff]
    %v50 = vld [vmem:[#allocation5 + $0x8] sm:$0xff]
    %v51 = vld [vmem:[#allocation5 + $0x10] sm:$0xff]
    %v52 = vld [vmem:[#allocation5 + $0x18] sm:$0xff]
    %v53 = vld [vmem:[#allocation5 + $0x20] sm:$0xff]
    %v54 = vld [vmem:[#allocation5 + $0x28] sm:$0xff]
    %v55 = vld [vmem:[#allocation5 + $0x30] sm:$0xff]
    %v56 = vld [vmem:[#allocation5 + $0x38] sm:$0xff]
    %v57 = vld [vmem:[#allocation5 + $0x40] sm:$0xff]
    %v58 = vld [vmem:[#allocation5 + $0x48] sm:$0xff]
    %v59 = vld [vmem:[#allocation5 + $0x50] sm:$0xff]
    %v60 = vld [vmem:[#allocation5 + $0x58] sm:$0xff]
    %v61 = vld [vmem:[#allocation5 + $0x60] sm:$0xff]
    %v62 = vld [vmem:[#allocation5 + $0x68] sm:$0xff]
    %v63 = vld [vmem:[#allocation5 + $0x70] sm:$0xff]
    %v64 = vld [vmem:[#allocation5 + $0x78] sm:$0xff]
    %v65 = vld [vmem:[%s2] sm:$0x1]
    %v67 = vperm.slane %v65, 0
    %69 = vmatpush.msra.mxu0 %v64
    %70 = vmatpush.msra.mxu0 %v63
    %71 = vmatpush.msra.mxu0 %v62
    %72 = vmatpush.msra.mxu0 %v61
    %73 = vmatpush.msra.mxu0 %v60
    %74 = vmatpush.msra.mxu0 %v59
    %75 = vmatpush.msra.mxu0 %v58
    %76 = vmatpush.msra.mxu0 %v57
    %77 = vmatpush.msra.mxu0 %v56
    %78 = vmatpush.msra.mxu0 %v55
    %79 = vmatpush.msra.mxu0 %v54
    %80 = vmatpush.msra.mxu0 %v53
    %81 = vmatpush.msra.mxu0 %v52
    %82 = vmatpush.msra.mxu0 %v51
    %83 = vmatpush.msra.mxu0 %v50
    %84 = vmatpush.msra.mxu0 %v49
    %85 = vmatmul.f32.gmra.mxu0 %v47
    %v86 = vpop.f32.mrf.mxu0
    %v87 = vadd.f32 %v67, %v86
    %88 = vmatmul.f32.gmra.mxu0 %v48
    %v89 = vpop.f32.mrf.mxu0
    %v90 = vadd.f32 %v67, %v89
    %91 = vdwg.mxu0
    %92 = vst [vmem:[#allocation7] sm:$0xff] %v87
    %93 = vst [vmem:[#allocation7 + $0x8] sm:$0xff] %v90
    // Predicated region
    $region22: #{tpu_custom_call.1} parent=1 // pred_check
      _
    $region23: #{tpu_custom_call.1} parent=1 // pred_check_branch
      %95 = sbr.rel (0) target = $region25
    $region24: #{tpu_custom_call.1} parent=1 // pred_region
      %97 = vsyncadd [#allocation4], 0
      %s98 = sshll.u32 [#allocation7], 4
      %s99 = int_to_ptr.vmem [resolvable:$true] %s98
      %s100 = sshll.u32 %s3, 4
      %s101 = int_to_ptr.hbm [resolvable:$true] %s100
      %106 = dma.vmem_to_hbm [thread:$0]  %s99, 256, %s101, [#allocation4], 128, 128, 8
    $region25: #{tpu_custom_call.1} parent=1 // pred_fallthru
      _
    // Predicated region
    $region26: #{tpu_custom_call.1} parent=1 // pred_check
      _
    $region27: #{tpu_custom_call.1} parent=1 // pred_check_branch
      %108 = sbr.rel (0) target = $region29
    $region28: #{tpu_custom_call.1} parent=1 // pred_region
      %110 = dma.done [#allocation4], 256
    $region29: #{tpu_custom_call.1} parent=1 // pred_fallthru
      _
    %111 = vsyncpa [#allocation3], 1
    %112 = vsyncpa [#allocation6], 1
    %113 = vsyncpa [#allocation4], 1

</llo_original>
